<compile_context>
chip_gen: v5e
topology: v5e:2x2
jax: 0.10.0
libtpu: 0.0.40
codegen_flags: <defaults>
</compile_context>

<pallas_src>
import math
import functools

import jax
import jax.numpy as jnp
from jax import lax
from jax.experimental import pallas as pl
from jax.experimental.pallas import tpu as pltpu


def _round_up(v, m):
    return (v + m - 1) // m * m


def _sublane_multiple(dtype):
    itemsize = jnp.dtype(dtype).itemsize
    if itemsize >= 4:
        return 8
    if itemsize == 2:
        return 16
    return 32


def _vmem_capacity_bytes():
    """Physical VMEM of the local chip; conservative 64 MiB (v7x) fallback."""
    try:
        info = pltpu.get_tpu_info()
        for attr in ("vmem_capacity_bytes", "vmem_size_bytes", "vmem_bytes"):
            v = getattr(info, attr, None)
            if v:
                return int(v)
    except Exception:
        pass
    return 64 * 1024 * 1024


_SQRT2 = math.sqrt(2.0)
# x[M,K] . w[N,K]^T  — rhs-transposed matmul (MXU-native, no materialized transpose).
_NT_DIMS = (((1,), (1,)), ((), ()))


def _apply_epilogue(acc, b_ref, weight_gain, activation):
    acc = acc * jnp.float32(weight_gain)
    if b_ref is not None:
        acc = acc + b_ref[...]  # bias pre-scaled by bias_gain, f32, (1, tn)
    if activation == "linear":
        return acc
    if activation == "lrelu":
        return jnp.where(acc >= 0, acc, 0.2 * acc) * jnp.float32(_SQRT2)
    if activation == "relu":
        return jnp.maximum(acc, 0.0) * jnp.float32(_SQRT2)
    # TODO(synk): other bias_act activations (tanh/sigmoid/elu/...) not wired up.
    raise NotImplementedError(activation)


def _fc_kernel_single_k(*refs, weight_gain, activation, has_bias):
    """Single K tile: no accumulator scratch, no init/finalize phases."""
    if has_bias:
        x_ref, w_ref, b_ref, o_ref = refs
    else:
        x_ref, w_ref, o_ref = refs
        b_ref = None
    acc = lax.dot_general(x_ref[...], w_ref[...], _NT_DIMS,
                          preferred_element_type=jnp.float32)
    o_ref[...] = _apply_epilogue(acc, b_ref, weight_gain, activation).astype(o_ref.dtype)


def _fc_kernel_multi_k(*refs, weight_gain, activation, has_bias):
    """K-tiled reduction with f32 VMEM accumulator."""
    if has_bias:
        x_ref, w_ref, b_ref, o_ref, acc_ref = refs
    else:
        x_ref, w_ref, o_ref, acc_ref = refs
        b_ref = None

    k = pl.program_id(2)

    @pl.when(k == 0)
    def _():
        acc_ref[...] = jnp.zeros_like(acc_ref)

    acc_ref[...] += lax.dot_general(x_ref[...], w_ref[...], _NT_DIMS,
                                    preferred_element_type=jnp.float32)

    @pl.when(k == pl.num_programs(2) - 1)
    def _():
        o_ref[...] = _apply_epilogue(acc_ref[...], b_ref, weight_gain,
                                     activation).astype(o_ref.dtype)


def fully_connected_layer(x, weight, bias, *, lr_multiplier=1.0,
                          activation="linear",
                          max_tm=512, max_tn=512, max_tk=None):
    """Pallas TPU implementation of FullyConnectedLayer.forward.

    x:      [M, K]  (batch, in_features)
    weight: [N, K]  (out_features, in_features)  -- native layout, no transpose
    bias:   [N] or None
    """
    M, K = x.shape
    N, K2 = weight.shape
    assert K == K2
    weight_gain = float(lr_multiplier) / math.sqrt(K)
    bias_gain = float(lr_multiplier)
    has_bias = bias is not None
    out_dtype = x.dtype

    xb = jnp.dtype(x.dtype).itemsize
    wb = xb  # weight is cast to x.dtype
    ob = jnp.dtype(out_dtype).itemsize

    # ---- tile sizing (big tiles, generation-aware VMEM budget) ----
    sub = _sublane_multiple(x.dtype)
    if max_tk is None:
        max_tk = 1024 if xb >= 4 else 2048
    tm = min(_round_up(M, sub), max_tm)         # small M stays fully resident
    tn = min(_round_up(N, 128), max_tn)
    tk = min(_round_up(K, 128), max_tk)

    phys_vmem = _vmem_capacity_bytes()
    # ~3/8 of physical VMEM for the pipeline: ~24 MiB on v7x, 48 MiB v5e/v6e.
    budget = min(phys_vmem * 3 // 8, 48 * 1024 * 1024)

    def _footprint(tm_, tn_, tk_):
        return (2 * tm_ * tk_ * xb              # x tile, double-buffered
                + 2 * tn_ * tk_ * wb            # weight tile, double-buffered
                + 2 * tm_ * tn_ * ob            # output tile, double-buffered
                + tm_ * tn_ * 4                 # f32 accumulator (worst case)
                + (2 * tn_ * 4 if has_bias else 0))

    while _footprint(tm, tn, tk) > budget:
        if tk > 512:
            tk = _round_up(tk // 2, 128)
        elif tn > 256:
            tn = _round_up(tn // 2, 128)
        elif tm > 128:
            tm = _round_up(tm // 2, sub)
        else:
            break

    Mp = _round_up(M, tm)
    Np = _round_up(N, tn)
    Kp = _round_up(K, tk)

    # v7x megacore occupancy: if the whole batch is one M tile, split N into
    # >=2 parallel tiles so both TensorCores get work (harmless on 1-TC chips).
    if Mp // tm == 1 and Np // tn == 1 and Np >= 256:
        tn_half = _round_up(Np // 2, 128)
        if 128 <= tn_half < tn:
            tn = tn_half
            Np = _round_up(N, tn)

    grid_m, grid_n, grid_k = Mp // tm, Np // tn, Kp // tk
    multi_k = grid_k > 1

    # ---- operand prep (weight kept [N, K]; MXU consumes it transposed) ----
    w = weight if weight.dtype == x.dtype else weight.astype(x.dtype)
    x_p = x if (Mp == M and Kp == K) else jnp.pad(x, ((0, Mp - M), (0, Kp - K)))
    w_p = w if (Np == N and Kp == K) else jnp.pad(w, ((0, Np - N), (0, Kp - K)))
    args = [x_p, w_p]

    if multi_k:
        in_specs = [
            pl.BlockSpec((tm, tk), lambda i, j, k: (i, k)),
            pl.BlockSpec((tn, tk), lambda i, j, k: (j, k)),
        ]
        out_spec = pl.BlockSpec((tm, tn), lambda i, j, k: (i, j))
        bias_spec = pl.BlockSpec((1, tn), lambda i, j, k: (0, j))
        grid = (grid_m, grid_n, grid_k)
        scratch_shapes = [pltpu.VMEM((tm, tn), jnp.float32)]
        semantics = ("parallel", "parallel", "arbitrary")
        kernel_fn = _fc_kernel_multi_k
    else:
        in_specs = [
            pl.BlockSpec((tm, Kp), lambda i, j: (i, 0)),
            pl.BlockSpec((tn, Kp), lambda i, j: (j, 0)),
        ]
        out_spec = pl.BlockSpec((tm, tn), lambda i, j: (i, j))
        bias_spec = pl.BlockSpec((1, tn), lambda i, j: (0, j))
        grid = (grid_m, grid_n)
        scratch_shapes = []
        semantics = ("parallel", "parallel")
        kernel_fn = _fc_kernel_single_k

    if has_bias:
        # Fold bias_gain once, keep bias f32 (matches addmm-style accumulation).
        b = bias.astype(jnp.float32) * bias_gain
        b_p = b if Np == N else jnp.pad(b, ((0, Np - N),))
        args.append(b_p.reshape(1, Np))
        in_specs.append(bias_spec)

    kernel = functools.partial(kernel_fn, weight_gain=weight_gain,
                               activation=activation, has_bias=has_bias)

    # Explicit scoped-VMEM limit sized from the chosen tiles (+headroom) so the
    # enlarged tiles never collide with the 16/32 MiB scoped defaults.
    vmem_need = _footprint(tm, tn, tk)
    vmem_limit = int(min(phys_vmem * 9 // 10,
                         max(int(vmem_need * 1.3) + (4 << 20), 32 << 20)))

    # Actual streaming: x re-read once per N tile, w once per M tile.
    bytes_accessed = (grid_n * Mp * Kp * xb
                      + grid_m * Np * Kp * wb
                      + (grid_m * Np * 4 if has_bias else 0)
                      + Mp * Np * ob)
    cost = pl.CostEstimate(flops=2 * Mp * Np * Kp, transcendentals=0,
                           bytes_accessed=int(bytes_accessed))

    out = pl.pallas_call(
        kernel,
        out_shape=jax.ShapeDtypeStruct((Mp, Np), out_dtype),
        grid_spec=pltpu.PrefetchScalarGridSpec(
            num_scalar_prefetch=0,
            grid=grid,
            in_specs=in_specs,
            out_specs=out_spec,
            scratch_shapes=scratch_shapes,
        ),
        compiler_params=pltpu.CompilerParams(
            dimension_semantics=semantics,
            vmem_limit_bytes=vmem_limit,
        ),
        cost_estimate=cost,
    )(*args)

    if Mp != M or Np != N:
        out = out[:M, :N]
    return out


def _reference(x, weight, bias, *, lr_multiplier=1.0, activation="linear"):
    w = weight.astype(jnp.float32) * (lr_multiplier / math.sqrt(weight.shape[1]))
    b = None if bias is None else bias.astype(jnp.float32) * lr_multiplier
    y = x.astype(jnp.float32) @ w.T
    if b is not None:
        y = y + b[None, :]
    if activation == "lrelu":
        y = jnp.where(y >= 0, y, 0.2 * y) * math.sqrt(2.0)
    elif activation == "relu":
        y = jnp.maximum(y, 0.0) * math.sqrt(2.0)
    return y


if __name__ == "__main__":
    key = jax.random.PRNGKey(0)
    k_x, k_w, k_x2, k_w2 = jax.random.split(key, 4)

    # ---- test 1: small FC (single-K fast path), f32 ----
    batch, in_features, out_features = 8, 32, 64
    lr_multiplier, bias_init = 0.5, 0.1

    # Deterministic parameter init mirroring __init__:
    #   weight = randn([out, in]) / lr_multiplier ; bias = full([out], bias_init)
    x = jax.random.normal(k_x, (batch, in_features), dtype=jnp.float32)
    weight = jax.random.normal(k_w, (out_features, in_features),
                               dtype=jnp.float32) / lr_multiplier
    bias = jnp.full((out_features,), bias_init, dtype=jnp.float32)

    out_lin = jax.block_until_ready(fully_connected_layer(
        x, weight, bias, lr_multiplier=lr_multiplier, activation="linear"))
    ref_lin = _reference(x, weight, bias, lr_multiplier=lr_multiplier,
                         activation="linear")
    assert out_lin.shape == (batch, out_features)
    assert jnp.allclose(out_lin, ref_lin, atol=1e-4, rtol=1e-4)

    out_lr = jax.block_until_ready(fully_connected_layer(
        x, weight, bias, lr_multiplier=lr_multiplier, activation="lrelu"))
    ref_lr = _reference(x, weight, bias, lr_multiplier=lr_multiplier,
                        activation="lrelu")
    assert jnp.allclose(out_lr, ref_lr, atol=1e-4, rtol=1e-4)

    out_nb = jax.block_until_ready(fully_connected_layer(
        x, weight, None, lr_multiplier=lr_multiplier, activation="linear"))
    ref_nb = _reference(x, weight, None, lr_multiplier=lr_multiplier,
                        activation="linear")
    assert jnp.allclose(out_nb, ref_nb, atol=1e-4, rtol=1e-4)

    # ---- test 2: multi-K path + accumulator + N split for 2-TC occupancy ----
    x2 = jax.random.normal(k_x2, (4, 256), dtype=jnp.float32)
    w2 = jax.random.normal(k_w2, (512, 256), dtype=jnp.float32)
    b2 = jnp.full((512,), 0.05, dtype=jnp.float32)
    out2 = jax.block_until_ready(fully_connected_layer(
        x2, w2, b2, lr_multiplier=1.0, activation="lrelu", max_tk=128))
    ref2 = _reference(x2, w2, b2, lr_multiplier=1.0, activation="lrelu")
    assert out2.shape == (4, 512)
    assert jnp.allclose(out2, ref2, atol=1e-3, rtol=1e-3)

    # ---- test 3: bf16 inputs (dtype-aware sublane rounding, f32 accumulate) ----
    x3 = x.astype(jnp.bfloat16)
    w3 = weight.astype(jnp.bfloat16)
    out3 = jax.block_until_ready(fully_connected_layer(
        x3, w3, bias, lr_multiplier=lr_multiplier, activation="linear"))
    ref3 = _reference(x3, w3, bias, lr_multiplier=lr_multiplier,
                      activation="linear")
    assert out3.dtype == jnp.bfloat16
    assert jnp.allclose(out3.astype(jnp.float32), ref3, atol=0.1, rtol=0.1)

    print("KERNEL_OK")
</pallas_src>

<mosaic_0001>
module attributes {stable_mosaic.version = 11 : i64} {
  func.func @_fc_kernel_single_k(%arg0: i32, %arg1: i32, %arg2: memref<8x128xf32, #tpu.memory_space<vmem>>, %arg3: memref<128x128xf32, #tpu.memory_space<vmem>>, %arg4: memref<1x128xf32, #tpu.memory_space<vmem>>, %arg5: memref<8x128xf32, #tpu.memory_space<vmem>>) attributes {dimension_semantics = [#tpu.dimension_semantics<parallel>, #tpu.dimension_semantics<parallel>], iteration_bounds = array<i64: 1, 1>, scalar_prefetch = 0 : i64, scratch_operands = 0 : i64, tpu.core_type = #tpu.core_type<tc>, window_params = [{transform_indices = @transform_0, window_bounds = array<i64: 8, 128>}, {transform_indices = @transform_1, window_bounds = array<i64: 128, 128>}, {transform_indices = @transform_2, window_bounds = array<i64: 1, 128>}, {transform_indices = @transform_3, window_bounds = array<i64: 8, 128>}]} {
    %c0 = arith.constant 0 : index
    %c0_0 = arith.constant 0 : index
    %0 = vector.load %arg2[%c0, %c0_0] : memref<8x128xf32, #tpu.memory_space<vmem>>, vector<8x128xf32>
    %c0_1 = arith.constant 0 : index
    %c0_2 = arith.constant 0 : index
    %1 = vector.load %arg3[%c0_1, %c0_2] : memref<128x128xf32, #tpu.memory_space<vmem>>, vector<128x128xf32>
    %cst = arith.constant dense<0.000000e+00> : vector<8x128xf32>
    %2 = tpu.matmul %0, %1, %cst {dimension_numbers = #tpu.dot_dimension_numbers<[1], [1], [0], [0], [0, 0, 1, 0], [], []>} : vector<8x128xf32>, vector<128x128xf32>, vector<8x128xf32> -> vector<8x128xf32>
    %cst_3 = arith.constant 0.0883883461 : f32
    %3 = vector.broadcast %cst_3 : f32 to vector<8x128xf32>
    %4 = arith.mulf %2, %3 : vector<8x128xf32>
    %c0_4 = arith.constant 0 : index
    %c0_5 = arith.constant 0 : index
    %5 = vector.load %arg4[%c0_4, %c0_5] : memref<1x128xf32, #tpu.memory_space<vmem>>, vector<1x128xf32>
    %6 = vector.broadcast %5 : vector<1x128xf32> to vector<8x128xf32>
    %7 = arith.addf %4, %6 : vector<8x128xf32>
    %c0_6 = arith.constant 0 : index
    %c0_7 = arith.constant 0 : index
    %8 = vector.load %arg5[%c0_6, %c0_7] : memref<8x128xf32, #tpu.memory_space<vmem>>, vector<8x128xf32>
    tpu.vector_store %arg5[%c0_6, %c0_7], %7 {strides = array<i32>} : memref<8x128xf32, #tpu.memory_space<vmem>>, vector<8x128xf32>,
    return
  }
  func.func @transform_0(%arg0: i32, %arg1: i32) -> (i32, i32) {
    %c0_i32 = arith.constant 0 : i32
    %c0_i32_0 = arith.constant 0 : i32
    return %arg0, %c0_i32 : i32, i32
  }
  func.func @transform_1(%arg0: i32, %arg1: i32) -> (i32, i32) {
    %c0_i32 = arith.constant 0 : i32
    %c0_i32_0 = arith.constant 0 : i32
    return %arg1, %c0_i32 : i32, i32
  }
  func.func @transform_2(%arg0: i32, %arg1: i32) -> (i32, i32) {
    %c0_i32 = arith.constant 0 : i32
    %c0_i32_0 = arith.constant 0 : i32
    return %c0_i32, %arg1 : i32, i32
  }
  func.func @transform_3(%arg0: i32, %arg1: i32) -> (i32, i32) {
    %c0_i32 = arith.constant 0 : i32
    return %arg0, %arg1 : i32, i32
  }
}

</mosaic_0001>

<llo_original>
// kernel: tpu_custom_call.1
$region0: #{tpu_custom_call.1}
  #allocation0 [shape = 'u32[]', space=smem, size = 0x4, offset = 0x4, fixed_abs, tag = 'smem constant byte address 0x4 - core index']
  #allocation1 [shape = 'u32[72,128]{1,0:T(1,128)}', space=vmem, size = 0x9000, scoped, tag = 'internal scratch']
  %s0 = inlined_call_operand.hbm [shape: f32[8,128], index: 0, kind: input, shape index: {}]
  %s1 = inlined_call_operand.hbm [shape: f32[128,128], index: 1, kind: input, shape index: {}]
  %s2 = inlined_call_operand.vmem [shape: f32[1,128], index: 2, kind: input, shape index: {}]
  %s3 = inlined_call_operand.hbm [shape: f32[8,128], index: 3, kind: output, shape index: {}]
  %s4 = sld [smem:[#allocation0]]
  $region30: #{tpu_custom_call.1} parent=0
    _
  %s6 = ssub.s32 1, %s4
  %s7 = scalar_select 0, %s6, %s4
  $region1: #{tpu_custom_call.1} parent=0
    #allocation2 [shape = 'u8[4096]{0}', space=vmem, size = 0x1000, scoped, tag = 'input window, operand 0, single buffered']
    #allocation3 [shape = 's32[1]{0}', space=sflag, size = 0x4, scoped, tag = 'scoped memory for tpu_custom_call.1']
    #allocation4 [shape = 's32[1]{0}', space=sflag, size = 0x4, scoped, tag = 'scoped memory for tpu_custom_call.1']
    #allocation5 [shape = 'u8[65536]{0}', space=vmem, size = 0x10000, scoped, tag = 'input window, operand 1, single buffered']
    #allocation6 [shape = 's32[1]{0}', space=sflag, size = 0x4, scoped, tag = 'scoped memory for tpu_custom_call.1']
    #allocation7 [shape = 'u8[4096]{0}', space=vmem, size = 0x1000, scoped, tag = 'output window, operand 0, single buffered']
    %8 = vsyncpa [#allocation3], 0
    %9 = vsyncpa [#allocation6], 0
    %10 = vsyncpa [#allocation4], 0
    // Predicated region
    $region2: #{tpu_custom_call.1} parent=1 // pred_check
      _
    $region3: #{tpu_custom_call.1} parent=1 // pred_check_branch
      %12 = sbr.rel (0) target = $region5
    $region4: #{tpu_custom_call.1} parent=1 // pred_region
      %14 = vsyncadd [#allocation3], 0
      %s16 = sshll.u32 %s0, 4
      %s17 = int_to_ptr.hbm [resolvable:$true] %s16
      %s18 = sshll.u32 [#allocation2], 4
      %s19 = int_to_ptr.vmem [resolvable:$true] %s18
      %21 = dma.hbm_to_vmem [thread:$0]  %s17, 128, %s19, [#allocation3]
    $region5: #{tpu_custom_call.1} parent=1 // pred_fallthru
      _
    // Predicated region
    $region6: #{tpu_custom_call.1} parent=1 // pred_check
      _
    $region7: #{tpu_custom_call.1} parent=1 // pred_check_branch
      %23 = sbr.rel (0) target = $region9
    $region8: #{tpu_custom_call.1} parent=1 // pred_region
      %25 = vsyncadd [#allocation6], 0
      %s26 = sshll.u32 %s1, 4
      %s27 = int_to_ptr.hbm [resolvable:$true] %s26
      %s28 = sshll.u32 [#allocation5], 4
      %s29 = int_to_ptr.vmem [resolvable:$true] %s28
      %34 = dma.hbm_to_vmem [thread:$0]  %s27, 2048, %s29, [#allocation6], 128, 128, 8
    $region9: #{tpu_custom_call.1} parent=1 // pred_fallthru
      _
    // Predicated region
    $region10: #{tpu_custom_call.1} parent=1 // pred_check
      _
    $region11: #{tpu_custom_call.1} parent=1 // pred_check_branch
      %36 = sbr.rel (0) target = $region13
    $region12: #{tpu_custom_call.1} parent=1 // pred_region
      _
    $region13: #{tpu_custom_call.1} parent=1 // pred_fallthru
      _
    // Predicated region
    $region14: #{tpu_custom_call.1} parent=1 // pred_check
      _
    $region15: #{tpu_custom_call.1} parent=1 // pred_check_branch
      %38 = sbr.rel (0) target = $region17
    $region16: #{tpu_custom_call.1} parent=1 // pred_region
      %40 = dma.done [#allocation3], 128
    $region17: #{tpu_custom_call.1} parent=1 // pred_fallthru
      _
    // Predicated region
    $region18: #{tpu_custom_call.1} parent=1 // pred_check
      _
    $region19: #{tpu_custom_call.1} parent=1 // pred_check_branch
      %42 = sbr.rel (0) target = $region21
    $region20: #{tpu_custom_call.1} parent=1 // pred_region
      %44 = dma.done [#allocation6], 2048
    $region21: #{tpu_custom_call.1} parent=1 // pred_fallthru
      _
    %v45 = vld [vmem:[#allocation2] sm:$0xff]
    %v46 = vld [vmem:[#allocation5] sm:$0xff]
    %v47 = vld [vmem:[#allocation5 + $0x8] sm:$0xff]
    %v48 = vld [vmem:[#allocation5 + $0x10] sm:$0xff]
    %v49 = vld [vmem:[#allocation5 + $0x18] sm:$0xff]
    %v50 = vld [vmem:[#allocation5 + $0x20] sm:$0xff]
    %v51 = vld [vmem:[#allocation5 + $0x28] sm:$0xff]
    %v52 = vld [vmem:[#allocation5 + $0x30] sm:$0xff]
    %v53 = vld [vmem:[#allocation5 + $0x38] sm:$0xff]
    %v54 = vld [vmem:[#allocation5 + $0x40] sm:$0xff]
    %v55 = vld [vmem:[#allocation5 + $0x48] sm:$0xff]
    %v56 = vld [vmem:[#allocation5 + $0x50] sm:$0xff]
    %v57 = vld [vmem:[#allocation5 + $0x58] sm:$0xff]
    %v58 = vld [vmem:[#allocation5 + $0x60] sm:$0xff]
    %v59 = vld [vmem:[#allocation5 + $0x68] sm:$0xff]
    %v60 = vld [vmem:[#allocation5 + $0x70] sm:$0xff]
    %v61 = vld [vmem:[#allocation5 + $0x78] sm:$0xff]
    %62 = vmatpush.xpose.msra.mxu0 %v61
    %63 = vmatpush.xpose.msra.mxu0 %v60
    %64 = vmatpush.xpose.msra.mxu0 %v59
    %65 = vmatpush.xpose.msra.mxu0 %v58
    %66 = vmatpush.xpose.msra.mxu0 %v57
    %67 = vmatpush.xpose.msra.mxu0 %v56
    %68 = vmatpush.xpose.msra.mxu0 %v55
    %69 = vmatpush.xpose.msra.mxu0 %v54
    %70 = vmatpush.xpose.msra.mxu0 %v53
    %71 = vmatpush.xpose.msra.mxu0 %v52
    %72 = vmatpush.xpose.msra.mxu0 %v51
    %73 = vmatpush.xpose.msra.mxu0 %v50
    %74 = vmatpush.xpose.msra.mxu0 %v49
    %75 = vmatpush.xpose.msra.mxu0 %v48
    %76 = vmatpush.xpose.msra.mxu0 %v47
    %77 = vmatpush.xpose.msra.mxu0 %v46
    %78 = vmatmul.f32.gmra.mxu0 %v45
    %v79 = vpop.f32.mrf.mxu0
    %v80 = vadd.f32 0.0, %v79
    %81 = vdwg.mxu0
    %v82 = vmul.f32 %v80, 0.088388346
    %v83 = vld [vmem:[%s2] sm:$0x1]
    %v85 = vperm.slane %v83, 0
    %v87 = vadd.f32 %v82, %v85
    %88 = vst [vmem:[#allocation7] sm:$0xff] %v87
    // Predicated region
    $region22: #{tpu_custom_call.1} parent=1 // pred_check
      _
    $region23: #{tpu_custom_call.1} parent=1 // pred_check_branch
      %90 = sbr.rel (0) target = $region25
    $region24: #{tpu_custom_call.1} parent=1 // pred_region
      %92 = vsyncadd [#allocation4], 0
      %s94 = sshll.u32 [#allocation7], 4
      %s95 = int_to_ptr.vmem [resolvable:$true] %s94
      %s96 = sshll.u32 %s3, 4
      %s97 = int_to_ptr.hbm [resolvable:$true] %s96
      %99 = dma.vmem_to_hbm [thread:$0]  %s95, 128, %s97, [#allocation4]
    $region25: #{tpu_custom_call.1} parent=1 // pred_fallthru
      _
    // Predicated region
    $region26: #{tpu_custom_call.1} parent=1 // pred_check
      _
    $region27: #{tpu_custom_call.1} parent=1 // pred_check_branch
      %101 = sbr.rel (0) target = $region29
    $region28: #{tpu_custom_call.1} parent=1 // pred_region
      %103 = dma.done [#allocation4], 128
    $region29: #{tpu_custom_call.1} parent=1 // pred_fallthru
      _
    %104 = vsyncpa [#allocation3], 1
    %105 = vsyncpa [#allocation6], 1
    %106 = vsyncpa [#allocation4], 1

</llo_original>
